<compile_context>
chip_gen: v5e
topology: v5e:2x2
jax: 0.10.0
libtpu: 0.0.40
codegen_flags: <defaults>
</compile_context>

<pallas_src>
import math

import jax
import jax.numpy as jnp
from jax.experimental import pallas as pl
from jax.experimental.pallas import tpu as pltpu

EPS = 1e-5
_VMEM_LIMIT_BYTES = 32 << 20     # safe on v5e/v6e/v7x
_BLOCK_BYTE_BUDGET = 4 << 20     # target bytes per input block (f32-equivalent)
_MAX_TILE_ROWS = 2048            # cap from measured roofline plateau


# ----------------------------------------------------------------------------
# Kernels
# ----------------------------------------------------------------------------
def _ln_packed_kernel(x_ref, w_ref, b_ref, avg_ref, o_ref):
    """Lane-packed path.  x_ref: (T, L) with L = G*C = 128 lanes.

    avg_ref is a block-diagonal (L, L) matrix with G blocks of ones(C, C)/C,
    so x @ avg broadcasts each C-segment's mean across that segment.
    """
    x = x_ref[...].astype(jnp.float32)
    avg = avg_ref[...]
    mu = jnp.dot(x, avg, preferred_element_type=jnp.float32,
                 precision=jax.lax.Precision.HIGHEST)
    xc = x - mu
    var = jnp.dot(xc * xc, avg, preferred_element_type=jnp.float32,
                  precision=jax.lax.Precision.HIGHEST)
    inv = jax.lax.rsqrt(var + EPS)
    y = xc * inv * w_ref[...].astype(jnp.float32) + b_ref[...].astype(jnp.float32)
    o_ref[...] = y.astype(o_ref.dtype)


def _ln_rowwise_kernel(x_ref, w_ref, b_ref, o_ref):
    """Fallback path (C not a divisor of 128).  x_ref: (T, C)."""
    x = x_ref[...].astype(jnp.float32)
    mu = jnp.mean(x, axis=-1, keepdims=True)
    xc = x - mu
    var = jnp.mean(xc * xc, axis=-1, keepdims=True)   # unbiased=False
    inv = jax.lax.rsqrt(var + EPS)
    y = xc * inv * w_ref[...].astype(jnp.float32) + b_ref[...].astype(jnp.float32)
    o_ref[...] = y.astype(o_ref.dtype)


# ----------------------------------------------------------------------------
# Tiling helper
# ----------------------------------------------------------------------------
def _pick_tile_rows(total_rows, lane_width, dtype, requested=None):
    """Pick a row-tile: big enough to amortize per-step overhead, multiple of 8,
    never bigger than the (rounded-up) work, and >=2 grid steps when possible
    so the v7x megacore can shard the parallel axis."""
    if requested is None:
        bpe = max(jnp.dtype(dtype).itemsize, 4)      # budget in f32-equivalent
        t = max(8, _BLOCK_BYTE_BUDGET // (lane_width * bpe))
        t = min(t, _MAX_TILE_ROWS)
        if total_rows > 16 and pl.cdiv(total_rows, t) < 2:
            t = pl.cdiv(total_rows, 2)
    else:
        t = requested
    t = max(8, (int(t) // 8) * 8)
    t = min(t, max(8, ((total_rows + 7) // 8) * 8))
    return int(t)


def _compiler_params():
    return pltpu.CompilerParams(
        dimension_semantics=("parallel",),
        vmem_limit_bytes=_VMEM_LIMIT_BYTES,
    )


# ----------------------------------------------------------------------------
# Wrapper
# ----------------------------------------------------------------------------
def withbias_layernorm(x, weight, bias, *, tile_rows=None):
    """x: (..., C), weight/bias: (C,). Returns same shape/dtype as x."""
    orig_shape = x.shape
    C = orig_shape[-1]
    rows = math.prod(orig_shape[:-1]) if len(orig_shape) > 1 else 1
    x2d = x.reshape(rows, C)

    if 128 % C == 0:
        # ---------------- lane-dense packed path ----------------
        G = 128 // C
        L = G * C  # == 128
        rows_g = pl.cdiv(rows, G) * G
        if rows_g != rows:
            x2d = jnp.pad(x2d, ((0, rows_g - rows), (0, 0)))
        packed_rows = rows_g // G
        xp = x2d.reshape(packed_rows, L)

        t = _pick_tile_rows(packed_rows, L, x.dtype, tile_rows)
        padded_rows = pl.cdiv(packed_rows, t) * t
        if padded_rows != packed_rows:
            xp = jnp.pad(xp, ((0, padded_rows - packed_rows), (0, 0)))
        grid = padded_rows // t

        w_p = jnp.tile(weight.astype(jnp.float32).reshape(1, C), (1, G))
        b_p = jnp.tile(bias.astype(jnp.float32).reshape(1, C), (1, G))
        avg = jnp.kron(jnp.eye(G, dtype=jnp.float32),
                       jnp.full((C, C), 1.0 / C, dtype=jnp.float32))

        out_p = pl.pallas_call(
            _ln_packed_kernel,
            out_shape=jax.ShapeDtypeStruct((padded_rows, L), x.dtype),
            grid_spec=pltpu.PrefetchScalarGridSpec(
                num_scalar_prefetch=0,
                grid=(grid,),
                in_specs=[
                    pl.BlockSpec((t, L), lambda i: (i, 0)),
                    pl.BlockSpec((1, L), lambda i: (0, 0)),
                    pl.BlockSpec((1, L), lambda i: (0, 0)),
                    pl.BlockSpec((L, L), lambda i: (0, 0)),
                ],
                out_specs=pl.BlockSpec((t, L), lambda i: (i, 0)),
            ),
            compiler_params=_compiler_params(),
        )(xp, w_p, b_p, avg)

        out2d = out_p[:packed_rows].reshape(rows_g, C)[:rows]
    else:
        # ---------------- row-wise fallback path ----------------
        t = _pick_tile_rows(rows, C, x.dtype, tile_rows)
        padded_rows = pl.cdiv(rows, t) * t
        xr = x2d if padded_rows == rows else jnp.pad(
            x2d, ((0, padded_rows - rows), (0, 0)))
        grid = padded_rows // t

        out_r = pl.pallas_call(
            _ln_rowwise_kernel,
            out_shape=jax.ShapeDtypeStruct((padded_rows, C), x.dtype),
            grid_spec=pltpu.PrefetchScalarGridSpec(
                num_scalar_prefetch=0,
                grid=(grid,),
                in_specs=[
                    pl.BlockSpec((t, C), lambda i: (i, 0)),
                    pl.BlockSpec((1, C), lambda i: (0, 0)),
                    pl.BlockSpec((1, C), lambda i: (0, 0)),
                ],
                out_specs=pl.BlockSpec((t, C), lambda i: (i, 0)),
            ),
            compiler_params=_compiler_params(),
        )(xr, weight.astype(jnp.float32).reshape(1, C),
          bias.astype(jnp.float32).reshape(1, C))

        out2d = out_r[:rows]

    return out2d.reshape(orig_shape)


# ----------------------------------------------------------------------------
# Reference + self-test
# ----------------------------------------------------------------------------
def _reference(x, weight, bias):
    x32 = x.astype(jnp.float32)
    mu = jnp.mean(x32, axis=-1, keepdims=True)
    var = jnp.mean((x32 - mu) ** 2, axis=-1, keepdims=True)
    y = (x32 - mu) / jnp.sqrt(var + EPS) * weight.astype(jnp.float32) \
        + bias.astype(jnp.float32)
    return y.astype(x.dtype)


if __name__ == "__main__":
    key = jax.random.PRNGKey(0)
    kx, kw, kb, kx2 = jax.random.split(key, 4)

    # Case 1: C=32 (divides 128) -> lane-packed path, G=4.
    B, N, C = 2, 16, 32
    x = jax.random.normal(kx, (B, N, C), dtype=jnp.float32)
    weight = 1.0 + 0.05 * jax.random.normal(kw, (C,), dtype=jnp.float32)
    bias = 0.05 * jax.random.normal(kb, (C,), dtype=jnp.float32)

    out = jax.block_until_ready(withbias_layernorm(x, weight, bias))
    ref = _reference(x, weight, bias)
    assert out.shape == (B, N, C)
    assert jnp.allclose(out, ref, atol=2e-5, rtol=2e-5), "packed path mismatch"

    # Case 2: C=48 (does not divide 128), ragged row count -> fallback path.
    B2, N2, C2 = 2, 20, 48
    x2 = jax.random.normal(kx2, (B2, N2, C2), dtype=jnp.float32)
    w2 = jnp.ones((C2,), dtype=jnp.float32)
    b2 = jnp.zeros((C2,), dtype=jnp.float32)
    out2 = jax.block_until_ready(withbias_layernorm(x2, w2, b2))
    ref2 = _reference(x2, w2, b2)
    assert out2.shape == (B2, N2, C2)
    assert jnp.allclose(out2, ref2, atol=2e-5, rtol=2e-5), "rowwise path mismatch"

    print("KERNEL_OK")
</pallas_src>

<mosaic_0001>
module attributes {stable_mosaic.version = 11 : i64} {
  func.func @_ln_packed_kernel(%arg0: i32, %arg1: memref<8x128xf32, #tpu.memory_space<vmem>>, %arg2: memref<1x128xf32, #tpu.memory_space<vmem>>, %arg3: memref<1x128xf32, #tpu.memory_space<vmem>>, %arg4: memref<128x128xf32, #tpu.memory_space<vmem>>, %arg5: memref<8x128xf32, #tpu.memory_space<vmem>>) attributes {dimension_semantics = [#tpu.dimension_semantics<parallel>], iteration_bounds = array<i64: 1>, scalar_prefetch = 0 : i64, scratch_operands = 0 : i64, tpu.core_type = #tpu.core_type<tc>, window_params = [{transform_indices = @transform_0, window_bounds = array<i64: 8, 128>}, {pipeline_mode = #tpu.pipeline_mode<synchronous>, transform_indices = @transform_1, window_bounds = array<i64: 1, 128>}, {pipeline_mode = #tpu.pipeline_mode<synchronous>, transform_indices = @transform_2, window_bounds = array<i64: 1, 128>}, {pipeline_mode = #tpu.pipeline_mode<synchronous>, transform_indices = @transform_3, window_bounds = array<i64: 128, 128>}, {transform_indices = @transform_4, window_bounds = array<i64: 8, 128>}]} {
    %c0 = arith.constant 0 : index
    %c0_0 = arith.constant 0 : index
    %0 = vector.load %arg1[%c0, %c0_0] : memref<8x128xf32, #tpu.memory_space<vmem>>, vector<8x128xf32>
    %c0_1 = arith.constant 0 : index
    %c0_2 = arith.constant 0 : index
    %1 = vector.load %arg4[%c0_1, %c0_2] : memref<128x128xf32, #tpu.memory_space<vmem>>, vector<128x128xf32>
    %cst = arith.constant dense<0.000000e+00> : vector<8x128xf32>
    %2 = tpu.matmul %0, %1, %cst {dimension_numbers = #tpu.dot_dimension_numbers<[1], [0], [0], [1], [0, 0, 1, 1], [], []>, precision = #tpu.contract_precision<fp32>} : vector<8x128xf32>, vector<128x128xf32>, vector<8x128xf32> -> vector<8x128xf32>
    %3 = arith.subf %0, %2 : vector<8x128xf32>
    %4 = arith.mulf %3, %3 : vector<8x128xf32>
    %cst_3 = arith.constant dense<0.000000e+00> : vector<8x128xf32>
    %5 = tpu.matmul %4, %1, %cst_3 {dimension_numbers = #tpu.dot_dimension_numbers<[1], [0], [0], [1], [0, 0, 1, 1], [], []>, precision = #tpu.contract_precision<fp32>} : vector<8x128xf32>, vector<128x128xf32>, vector<8x128xf32> -> vector<8x128xf32>
    %cst_4 = arith.constant 9.99999974E-6 : f32
    %6 = vector.broadcast %cst_4 : f32 to vector<8x128xf32>
    %7 = arith.addf %5, %6 : vector<8x128xf32>
    %8 = math.rsqrt %7 : vector<8x128xf32>
    %9 = arith.mulf %3, %8 : vector<8x128xf32>
    %c0_5 = arith.constant 0 : index
    %c0_6 = arith.constant 0 : index
    %10 = vector.load %arg2[%c0_5, %c0_6] : memref<1x128xf32, #tpu.memory_space<vmem>>, vector<1x128xf32>
    %11 = vector.broadcast %10 : vector<1x128xf32> to vector<8x128xf32>
    %12 = arith.mulf %9, %11 : vector<8x128xf32>
    %c0_7 = arith.constant 0 : index
    %c0_8 = arith.constant 0 : index
    %13 = vector.load %arg3[%c0_7, %c0_8] : memref<1x128xf32, #tpu.memory_space<vmem>>, vector<1x128xf32>
    %14 = vector.broadcast %13 : vector<1x128xf32> to vector<8x128xf32>
    %15 = arith.addf %12, %14 : vector<8x128xf32>
    %c0_9 = arith.constant 0 : index
    %c0_10 = arith.constant 0 : index
    %16 = vector.load %arg5[%c0_9, %c0_10] : memref<8x128xf32, #tpu.memory_space<vmem>>, vector<8x128xf32>
    tpu.vector_store %arg5[%c0_9, %c0_10], %15 {strides = array<i32>} : memref<8x128xf32, #tpu.memory_space<vmem>>, vector<8x128xf32>,
    return
  }
  func.func @transform_0(%arg0: i32) -> (i32, i32) {
    %c0_i32 = arith.constant 0 : i32
    %c0_i32_0 = arith.constant 0 : i32
    return %arg0, %c0_i32 : i32, i32
  }
  func.func @transform_1(%arg0: i32) -> (i32, i32) {
    %c0_i32 = arith.constant 0 : i32
    %c0_i32_0 = arith.constant 0 : i32
    %c0_i32_1 = arith.constant 0 : i32
    return %c0_i32, %c0_i32_0 : i32, i32
  }
  func.func @transform_2(%arg0: i32) -> (i32, i32) {
    %c0_i32 = arith.constant 0 : i32
    %c0_i32_0 = arith.constant 0 : i32
    %c0_i32_1 = arith.constant 0 : i32
    return %c0_i32, %c0_i32_0 : i32, i32
  }
  func.func @transform_3(%arg0: i32) -> (i32, i32) {
    %c0_i32 = arith.constant 0 : i32
    %c0_i32_0 = arith.constant 0 : i32
    %c0_i32_1 = arith.constant 0 : i32
    return %c0_i32, %c0_i32_0 : i32, i32
  }
  func.func @transform_4(%arg0: i32) -> (i32, i32) {
    %c0_i32 = arith.constant 0 : i32
    %c0_i32_0 = arith.constant 0 : i32
    return %arg0, %c0_i32 : i32, i32
  }
}

</mosaic_0001>

<llo_original>
// kernel: tpu_custom_call.1
$region0: #{tpu_custom_call.1}
  #allocation0 [shape = 'u32[]', space=smem, size = 0x4, offset = 0x4, fixed_abs, tag = 'smem constant byte address 0x4 - core index']
  #allocation1 [shape = 'u32[72,128]{1,0:T(1,128)}', space=vmem, size = 0x9000, scoped, tag = 'internal scratch']
  %s0 = inlined_call_operand.hbm [shape: f32[8,128], index: 0, kind: input, shape index: {}]
  %s1 = inlined_call_operand.hbm [shape: f32[1,128], index: 1, kind: input, shape index: {}]
  %s2 = inlined_call_operand.vmem [shape: f32[1,128], index: 2, kind: input, shape index: {}]
  %s3 = inlined_call_operand.hbm [shape: f32[128,128], index: 3, kind: input, shape index: {}]
  %s4 = inlined_call_operand.hbm [shape: f32[8,128], index: 4, kind: output, shape index: {}]
  %s5 = sld [smem:[#allocation0]]
  $region38: #{tpu_custom_call.1} parent=0
    _
  %s7 = ssub.s32 1, %s5
  %s8 = scalar_select 0, %s7, %s5
  $region1: #{tpu_custom_call.1} parent=0
    #allocation2 [shape = 'u8[4096]{0}', space=vmem, size = 0x1000, scoped, tag = 'input window, operand 0, single buffered']
    #allocation3 [shape = 's32[1]{0}', space=sflag, size = 0x4, scoped, tag = 'scoped memory for tpu_custom_call.1']
    #allocation4 [shape = 's32[1]{0}', space=sflag, size = 0x4, scoped, tag = 'scoped memory for tpu_custom_call.1']
    #allocation5 [shape = 'u8[512]{0}', space=vmem, size = 0x400, scoped, tag = 'input window, operand 1, single buffered']
    #allocation6 [shape = 's32[1]{0}', space=sflag, size = 0x4, scoped, tag = 'scoped memory for tpu_custom_call.1']
    #allocation7 [shape = 'u8[65536]{0}', space=vmem, size = 0x10000, scoped, tag = 'input window, operand 3, single buffered']
    #allocation8 [shape = 'u8[4096]{0}', space=vmem, size = 0x1000, scoped, tag = 'output window, operand 0, single buffered']
    %9 = vsyncpa [#allocation3], 0
    %10 = vsyncpa [#allocation6], 0
    %11 = vsyncpa [#allocation4], 0
    // Predicated region
    $region2: #{tpu_custom_call.1} parent=1 // pred_check
      _
    $region3: #{tpu_custom_call.1} parent=1 // pred_check_branch
      %13 = sbr.rel (0) target = $region5
    $region4: #{tpu_custom_call.1} parent=1 // pred_region
      %15 = vsyncadd [#allocation3], 0
      %s17 = sshll.u32 %s0, 4
      %s18 = int_to_ptr.hbm [resolvable:$true] %s17
      %s19 = sshll.u32 [#allocation2], 4
      %s20 = int_to_ptr.vmem [resolvable:$true] %s19
      %22 = dma.hbm_to_vmem [thread:$0]  %s18, 128, %s20, [#allocation3]
    $region5: #{tpu_custom_call.1} parent=1 // pred_fallthru
      _
    // Predicated region
    $region6: #{tpu_custom_call.1} parent=1 // pred_check
      _
    $region7: #{tpu_custom_call.1} parent=1 // pred_check_branch
      %24 = sbr.rel (0) target = $region9
    $region8: #{tpu_custom_call.1} parent=1 // pred_region
      %26 = vsyncadd [#allocation6], 0
      %s28 = sshll.u32 %s1, 4
      %s29 = int_to_ptr.hbm [resolvable:$true] %s28
      %s30 = sshll.u32 [#allocation5], 4
      %s31 = int_to_ptr.vmem [resolvable:$true] %s30
      %33 = dma.hbm_to_vmem [thread:$0]  %s29, 16, %s31, [#allocation6]
    $region9: #{tpu_custom_call.1} parent=1 // pred_fallthru
      _
    // Predicated region
    $region10: #{tpu_custom_call.1} parent=1 // pred_check
      _
    $region11: #{tpu_custom_call.1} parent=1 // pred_check_branch
      %35 = sbr.rel (0) target = $region13
    $region12: #{tpu_custom_call.1} parent=1 // pred_region
      _
    $region13: #{tpu_custom_call.1} parent=1 // pred_fallthru
      _
    // Predicated region
    $region14: #{tpu_custom_call.1} parent=1 // pred_check
      _
    $region15: #{tpu_custom_call.1} parent=1 // pred_check_branch
      %37 = sbr.rel (0) target = $region17
    $region16: #{tpu_custom_call.1} parent=1 // pred_region
      %39 = vsyncadd [#allocation6], 0
      %s40 = sshll.u32 %s3, 4
      %s41 = int_to_ptr.hbm [resolvable:$true] %s40
      %s42 = sshll.u32 [#allocation7], 4
      %s43 = int_to_ptr.vmem [resolvable:$true] %s42
      %48 = dma.hbm_to_vmem [thread:$0]  %s41, 2048, %s43, [#allocation6], 128, 128, 8
    $region17: #{tpu_custom_call.1} parent=1 // pred_fallthru
      _
    // Predicated region
    $region18: #{tpu_custom_call.1} parent=1 // pred_check
      _
    $region19: #{tpu_custom_call.1} parent=1 // pred_check_branch
      %50 = sbr.rel (0) target = $region21
    $region20: #{tpu_custom_call.1} parent=1 // pred_region
      %52 = dma.done [#allocation3], 128
    $region21: #{tpu_custom_call.1} parent=1 // pred_fallthru
      _
    // Predicated region
    $region22: #{tpu_custom_call.1} parent=1 // pred_check
      _
    $region23: #{tpu_custom_call.1} parent=1 // pred_check_branch
      %54 = sbr.rel (0) target = $region25
    $region24: #{tpu_custom_call.1} parent=1 // pred_region
      %56 = dma.done [#allocation6], 16
    $region25: #{tpu_custom_call.1} parent=1 // pred_fallthru
      _
    // Predicated region
    $region26: #{tpu_custom_call.1} parent=1 // pred_check
      _
    $region27: #{tpu_custom_call.1} parent=1 // pred_check_branch
      %58 = sbr.rel (0) target = $region29
    $region28: #{tpu_custom_call.1} parent=1 // pred_region
      %60 = dma.done [#allocation6], 2048
    $region29: #{tpu_custom_call.1} parent=1 // pred_fallthru
      _
    %v61 = vld [vmem:[#allocation2] sm:$0xff]
    %v62 = vld [vmem:[#allocation7] sm:$0xff]
    %v63 = vld [vmem:[#allocation7 + $0x8] sm:$0xff]
    %v64 = vld [vmem:[#allocation7 + $0x10] sm:$0xff]
    %v65 = vld [vmem:[#allocation7 + $0x18] sm:$0xff]
    %v66 = vld [vmem:[#allocation7 + $0x20] sm:$0xff]
    %v67 = vld [vmem:[#allocation7 + $0x28] sm:$0xff]
    %v68 = vld [vmem:[#allocation7 + $0x30] sm:$0xff]
    %v69 = vld [vmem:[#allocation7 + $0x38] sm:$0xff]
    %v70 = vld [vmem:[#allocation7 + $0x40] sm:$0xff]
    %v71 = vld [vmem:[#allocation7 + $0x48] sm:$0xff]
    %v72 = vld [vmem:[#allocation7 + $0x50] sm:$0xff]
    %v73 = vld [vmem:[#allocation7 + $0x58] sm:$0xff]
    %v74 = vld [vmem:[#allocation7 + $0x60] sm:$0xff]
    %v75 = vld [vmem:[#allocation7 + $0x68] sm:$0xff]
    %v76 = vld [vmem:[#allocation7 + $0x70] sm:$0xff]
    %v77 = vld [vmem:[#allocation7 + $0x78] sm:$0xff]
    %v78 = vand.u32 %v77, 4294901760
    %79 = vmatpush.msra.mxu0 %v78
    %v80 = vand.u32 %v76, 4294901760
    %81 = vmatpush.msra.mxu0 %v80
    %v82 = vand.u32 %v75, 4294901760
    %83 = vmatpush.msra.mxu0 %v82
    %v84 = vand.u32 %v74, 4294901760
    %85 = vmatpush.msra.mxu0 %v84
    %v86 = vand.u32 %v73, 4294901760
    %87 = vmatpush.msra.mxu0 %v86
    %v88 = vand.u32 %v72, 4294901760
    %89 = vmatpush.msra.mxu0 %v88
    %v90 = vand.u32 %v71, 4294901760
    %91 = vmatpush.msra.mxu0 %v90
    %v92 = vand.u32 %v70, 4294901760
    %93 = vmatpush.msra.mxu0 %v92
    %v94 = vand.u32 %v69, 4294901760
    %95 = vmatpush.msra.mxu0 %v94
    %v96 = vand.u32 %v68, 4294901760
    %97 = vmatpush.msra.mxu0 %v96
    %v98 = vand.u32 %v67, 4294901760
    %99 = vmatpush.msra.mxu0 %v98
    %v100 = vand.u32 %v66, 4294901760
    %101 = vmatpush.msra.mxu0 %v100
    %v102 = vand.u32 %v65, 4294901760
    %103 = vmatpush.msra.mxu0 %v102
    %v104 = vand.u32 %v64, 4294901760
    %105 = vmatpush.msra.mxu0 %v104
    %v106 = vand.u32 %v63, 4294901760
    %107 = vmatpush.msra.mxu0 %v106
    %v108 = vand.u32 %v62, 4294901760
    %109 = vmatpush.msra.mxu0 %v108
    %v110 = vand.u32 %v61, 4294901760
    %v111 = vsub.f32 %v61, %v110
    %v112 = vand.u32 %v111, 4294901760
    %v113 = vsub.f32 %v111, %v112
    %v114 = vand.u32 %v113, 4294901760
    %115 = vmatmul.f32.gmra.mxu0 %v114
    %v116 = vpop.f32.mrf.mxu0
    %v117 = vadd.f32 0.0, %v116
    %118 = vdwg.mxu0
    %v119 = vand.u32 %v77, 4294901760
    %v120 = vsub.f32 %v77, %v119
    %v121 = vand.u32 %v120, 4294901760
    %v122 = vsub.f32 %v120, %v121
    %v123 = vand.u32 %v122, 4294901760
    %124 = vmatpush.msra.mxu0 %v123
    %v125 = vand.u32 %v76, 4294901760
    %v126 = vsub.f32 %v76, %v125
    %v127 = vand.u32 %v126, 4294901760
    %v128 = vsub.f32 %v126, %v127
    %v129 = vand.u32 %v128, 4294901760
    %130 = vmatpush.msra.mxu0 %v129
    %v131 = vand.u32 %v75, 4294901760
    %v132 = vsub.f32 %v75, %v131
    %v133 = vand.u32 %v132, 4294901760
    %v134 = vsub.f32 %v132, %v133
    %v135 = vand.u32 %v134, 4294901760
    %136 = vmatpush.msra.mxu0 %v135
    %v137 = vand.u32 %v74, 4294901760
    %v138 = vsub.f32 %v74, %v137
    %v139 = vand.u32 %v138, 4294901760
    %v140 = vsub.f32 %v138, %v139
    %v141 = vand.u32 %v140, 4294901760
    %142 = vmatpush.msra.mxu0 %v141
    %v143 = vand.u32 %v73, 4294901760
    %v144 = vsub.f32 %v73, %v143
    %v145 = vand.u32 %v144, 4294901760
    %v146 = vsub.f32 %v144, %v145
    %v147 = vand.u32 %v146, 4294901760
    %148 = vmatpush.msra.mxu0 %v147
    %v149 = vand.u32 %v72, 4294901760
    %v150 = vsub.f32 %v72, %v149
    %v151 = vand.u32 %v150, 4294901760
    %v152 = vsub.f32 %v150, %v151
    %v153 = vand.u32 %v152, 4294901760
    %154 = vmatpush.msra.mxu0 %v153
    %v155 = vand.u32 %v71, 4294901760
    %v156 = vsub.f32 %v71, %v155
    %v157 = vand.u32 %v156, 4294901760
    %v158 = vsub.f32 %v156, %v157
    %v159 = vand.u32 %v158, 4294901760
    %160 = vmatpush.msra.mxu0 %v159
    %v161 = vand.u32 %v70, 4294901760
    %v162 = vsub.f32 %v70, %v161
    %v163 = vand.u32 %v162, 4294901760
    %v164 = vsub.f32 %v162, %v163
    %v165 = vand.u32 %v164, 4294901760
    %166 = vmatpush.msra.mxu0 %v165
    %v167 = vand.u32 %v69, 4294901760
    %v168 = vsub.f32 %v69, %v167
    %v169 = vand.u32 %v168, 4294901760
    %v170 = vsub.f32 %v168, %v169
    %v171 = vand.u32 %v170, 4294901760
    %172 = vmatpush.msra.mxu0 %v171
    %v173 = vand.u32 %v68, 4294901760
    %v174 = vsub.f32 %v68, %v173
    %v175 = vand.u32 %v174, 4294901760
    %v176 = vsub.f32 %v174, %v175
    %v177 = vand.u32 %v176, 4294901760
    %178 = vmatpush.msra.mxu0 %v177
    %v179 = vand.u32 %v67, 4294901760
    %v180 = vsub.f32 %v67, %v179
    %v181 = vand.u32 %v180, 4294901760
    %v182 = vsub.f32 %v180, %v181
    %v183 = vand.u32 %v182, 4294901760
    %184 = vmatpush.msra.mxu0 %v183
    %v185 = vand.u32 %v66, 4294901760
    %v186 = vsub.f32 %v66, %v185
    %v187 = vand.u32 %v186, 4294901760
    %v188 = vsub.f32 %v186, %v187
    %v189 = vand.u32 %v188, 4294901760
    %190 = vmatpush.msra.mxu0 %v189
    %v191 = vand.u32 %v65, 4294901760
    %v192 = vsub.f32 %v65, %v191
    %v193 = vand.u32 %v192, 4294901760
    %v194 = vsub.f32 %v192, %v193
    %v195 = vand.u32 %v194, 4294901760
    %196 = vmatpush.msra.mxu0 %v195
    %v197 = vand.u32 %v64, 4294901760
    %v198 = vsub.f32 %v64, %v197
    %v199 = vand.u32 %v198, 4294901760
    %v200 = vsub.f32 %v198, %v199
    %v201 = vand.u32 %v200, 4294901760
    %202 = vmatpush.msra.mxu0 %v201
    %v203 = vand.u32 %v63, 4294901760
    %v204 = vsub.f32 %v63, %v203
    %v205 = vand.u32 %v204, 4294901760
    %v206 = vsub.f32 %v204, %v205
    %v207 = vand.u32 %v206, 4294901760
    %208 = vmatpush.msra.mxu0 %v207
    %v209 = vand.u32 %v62, 4294901760
    %v210 = vsub.f32 %v62, %v209
    %v211 = vand.u32 %v210, 4294901760
    %v212 = vsub.f32 %v210, %v211
    %v213 = vand.u32 %v212, 4294901760
    %214 = vmatpush.msra.mxu0 %v213
    %v215 = vand.u32 %v61, 4294901760
    %216 = vmatmul.f32.gmra.mxu0 %v215
    %v217 = vpop.f32.mrf.mxu0
    %v218 = vadd.f32 %v117, %v217
    %219 = vdwg.mxu0
    %v220 = vand.u32 %v77, 4294901760
    %v221 = vsub.f32 %v77, %v220
    %222 = vmatpush.msra.mxu0 %v221
    %v223 = vand.u32 %v76, 4294901760
    %v224 = vsub.f32 %v76, %v223
    %225 = vmatpush.msra.mxu0 %v224
    %v226 = vand.u32 %v75, 4294901760
    %v227 = vsub.f32 %v75, %v226
    %228 = vmatpush.msra.mxu0 %v227
    %v229 = vand.u32 %v74, 4294901760
    %v230 = vsub.f32 %v74, %v229
    %231 = vmatpush.msra.mxu0 %v230
    %v232 = vand.u32 %v73, 4294901760
    %v233 = vsub.f32 %v73, %v232
    %234 = vmatpush.msra.mxu0 %v233
    %v235 = vand.u32 %v72, 4294901760
    %v236 = vsub.f32 %v72, %v235
    %237 = vmatpush.msra.mxu0 %v236
    %v238 = vand.u32 %v71, 4294901760
    %v239 = vsub.f32 %v71, %v238
    %240 = vmatpush.msra.mxu0 %v239
    %v241 = vand.u32 %v70, 4294901760
    %v242 = vsub.f32 %v70, %v241
    %243 = vmatpush.msra.mxu0 %v242
    %v244 = vand.u32 %v69, 4294901760
    %v245 = vsub.f32 %v69, %v244
    %246 = vmatpush.msra.mxu0 %v245
    %v247 = vand.u32 %v68, 4294901760
    %v248 = vsub.f32 %v68, %v247
    %249 = vmatpush.msra.mxu0 %v248
    %v250 = vand.u32 %v67, 4294901760
    %v251 = vsub.f32 %v67, %v250
    %252 = vmatpush.msra.mxu0 %v251
    %v253 = vand.u32 %v66, 4294901760
    %v254 = vsub.f32 %v66, %v253
    %255 = vmatpush.msra.mxu0 %v254
    %v256 = vand.u32 %v65, 4294901760
    %v257 = vsub.f32 %v65, %v256
    %258 = vmatpush.msra.mxu0 %v257
    %v259 = vand.u32 %v64, 4294901760
    %v260 = vsub.f32 %v64, %v259
    %261 = vmatpush.msra.mxu0 %v260
    %v262 = vand.u32 %v63, 4294901760
    %v263 = vsub.f32 %v63, %v262
    %264 = vmatpush.msra.mxu0 %v263
    %v265 = vand.u32 %v62, 4294901760
    %v266 = vsub.f32 %v62, %v265
    %267 = vmatpush.msra.mxu0 %v266
    %v268 = vand.u32 %v61, 4294901760
    %v269 = vsub.f32 %v61, %v268
    %270 = vmatmul.f32.gmra.mxu0 %v269
    %v271 = vpop.f32.mrf.mxu0
    %v272 = vadd.f32 %v218, %v271
    %273 = vdwg.mxu0
    %v274 = vand.u32 %v77, 4294901760
    %275 = vmatpush.msra.mxu0 %v274
    %v276 = vand.u32 %v76, 4294901760
    %277 = vmatpush.msra.mxu0 %v276
    %v278 = vand.u32 %v75, 4294901760
    %279 = vmatpush.msra.mxu0 %v278
    %v280 = vand.u32 %v74, 4294901760
    %281 = vmatpush.msra.mxu0 %v280
    %v282 = vand.u32 %v73, 4294901760
    %283 = vmatpush.msra.mxu0 %v282
    %v284 = vand.u32 %v72, 4294901760
    %285 = vmatpush.msra.mxu0 %v284
    %v286 = vand.u32 %v71, 4294901760
    %287 = vmatpush.msra.mxu0 %v286
    %v288 = vand.u32 %v70, 4294901760
    %289 = vmatpush.msra.mxu0 %v288
    %v290 = vand.u32 %v69, 4294901760
    %291 = vmatpush.msra.mxu0 %v290
    %v292 = vand.u32 %v68, 4294901760
    %293 = vmatpush.msra.mxu0 %v292
    %v294 = vand.u32 %v67, 4294901760
    %295 = vmatpush.msra.mxu0 %v294
    %v296 = vand.u32 %v66, 4294901760
    %297 = vmatpush.msra.mxu0 %v296
    %v298 = vand.u32 %v65, 4294901760
    %299 = vmatpush.msra.mxu0 %v298
    %v300 = vand.u32 %v64, 4294901760
    %301 = vmatpush.msra.mxu0 %v300
    %v302 = vand.u32 %v63, 4294901760
    %303 = vmatpush.msra.mxu0 %v302
    %v304 = vand.u32 %v62, 4294901760
    %305 = vmatpush.msra.mxu0 %v304
    %v306 = vand.u32 %v61, 4294901760
    %v307 = vsub.f32 %v61, %v306
    %v308 = vand.u32 %v307, 4294901760
    %309 = vmatmul.f32.gmra.mxu0 %v308
    %v310 = vpop.f32.mrf.mxu0
    %v311 = vadd.f32 %v272, %v310
    %312 = vdwg.mxu0
    %v313 = vand.u32 %v77, 4294901760
    %v314 = vsub.f32 %v77, %v313
    %v315 = vand.u32 %v314, 4294901760
    %316 = vmatpush.msra.mxu0 %v315
    %v317 = vand.u32 %v76, 4294901760
    %v318 = vsub.f32 %v76, %v317
    %v319 = vand.u32 %v318, 4294901760
    %320 = vmatpush.msra.mxu0 %v319
    %v321 = vand.u32 %v75, 4294901760
    %v322 = vsub.f32 %v75, %v321
    %v323 = vand.u32 %v322, 4294901760
    %324 = vmatpush.msra.mxu0 %v323
    %v325 = vand.u32 %v74, 4294901760
    %v326 = vsub.f32 %v74, %v325
    %v327 = vand.u32 %v326, 4294901760
    %328 = vmatpush.msra.mxu0 %v327
    %v329 = vand.u32 %v73, 4294901760
    %v330 = vsub.f32 %v73, %v329
    %v331 = vand.u32 %v330, 4294901760
    %332 = vmatpush.msra.mxu0 %v331
    %v333 = vand.u32 %v72, 4294901760
    %v334 = vsub.f32 %v72, %v333
    %v335 = vand.u32 %v334, 4294901760
    %336 = vmatpush.msra.mxu0 %v335
    %v337 = vand.u32 %v71, 4294901760
    %v338 = vsub.f32 %v71, %v337
    %v339 = vand.u32 %v338, 4294901760
    %340 = vmatpush.msra.mxu0 %v339
    %v341 = vand.u32 %v70, 4294901760
    %v342 = vsub.f32 %v70, %v341
    %v343 = vand.u32 %v342, 4294901760
    %344 = vmatpush.msra.mxu0 %v343
    %v345 = vand.u32 %v69, 4294901760
    %v346 = vsub.f32 %v69, %v345
    %v347 = vand.u32 %v346, 4294901760
    %348 = vmatpush.msra.mxu0 %v347
    %v349 = vand.u32 %v68, 4294901760
    %v350 = vsub.f32 %v68, %v349
    %v351 = vand.u32 %v350, 4294901760
    %352 = vmatpush.msra.mxu0 %v351
    %v353 = vand.u32 %v67, 4294901760
    %v354 = vsub.f32 %v67, %v353
    %v355 = vand.u32 %v354, 4294901760
    %356 = vmatpush.msra.mxu0 %v355
    %v357 = vand.u32 %v66, 4294901760
    %v358 = vsub.f32 %v66, %v357
    %v359 = vand.u32 %v358, 4294901760
    %360 = vmatpush.msra.mxu0 %v359
    %v361 = vand.u32 %v65, 4294901760
    %v362 = vsub.f32 %v65, %v361
    %v363 = vand.u32 %v362, 4294901760
    %364 = vmatpush.msra.mxu0 %v363
    %v365 = vand.u32 %v64, 4294901760
    %v366 = vsub.f32 %v64, %v365
    %v367 = vand.u32 %v366, 4294901760
    %368 = vmatpush.msra.mxu0 %v367
    %v369 = vand.u32 %v63, 4294901760
    %v370 = vsub.f32 %v63, %v369
    %v371 = vand.u32 %v370, 4294901760
    %372 = vmatpush.msra.mxu0 %v371
    %v373 = vand.u32 %v62, 4294901760
    %v374 = vsub.f32 %v62, %v373
    %v375 = vand.u32 %v374, 4294901760
    %376 = vmatpush.msra.mxu0 %v375
    %v377 = vand.u32 %v61, 4294901760
    %378 = vmatmul.f32.gmra.mxu0 %v377
    %v379 = vpop.f32.mrf.mxu0
    %v380 = vadd.f32 %v311, %v379
    %381 = vdwg.mxu0
    %v382 = vand.u32 %v77, 4294901760
    %383 = vmatpush.msra.mxu0 %v382
    %v384 = vand.u32 %v76, 4294901760
    %385 = vmatpush.msra.mxu0 %v384
    %v386 = vand.u32 %v75, 4294901760
    %387 = vmatpush.msra.mxu0 %v386
    %v388 = vand.u32 %v74, 4294901760
    %389 = vmatpush.msra.mxu0 %v388
    %v390 = vand.u32 %v73, 4294901760
    %391 = vmatpush.msra.mxu0 %v390
    %v392 = vand.u32 %v72, 4294901760
    %393 = vmatpush.msra.mxu0 %v392
    %v394 = vand.u32 %v71, 4294901760
    %395 = vmatpush.msra.mxu0 %v394
    %v396 = vand.u32 %v70, 4294901760
    %397 = vmatpush.msra.mxu0 %v396
    %v398 = vand.u32 %v69, 4294901760
    %399 = vmatpush.msra.mxu0 %v398
    %v400 = vand.u32 %v68, 4294901760
    %401 = vmatpush.msra.mxu0 %v400
    %v402 = vand.u32 %v67, 4294901760
    %403 = vmatpush.msra.mxu0 %v402
    %v404 = vand.u32 %v66, 4294901760
    %405 = vmatpush.msra.mxu0 %v404
    %v406 = vand.u32 %v65, 4294901760
    %407 = vmatpush.msra.mxu0 %v406
    %v408 = vand.u32 %v64, 4294901760
    %409 = vmatpush.msra.mxu0 %v408
    %v410 = vand.u32 %v63, 4294901760
    %411 = vmatpush.msra.mxu0 %v410
    %v412 = vand.u32 %v62, 4294901760
    %413 = vmatpush.msra.mxu0 %v412
    %v414 = vand.u32 %v61, 4294901760
    %415 = vmatmul.f32.gmra.mxu0 %v414
    %v416 = vpop.f32.mrf.mxu0
    %v417 = vadd.f32 %v380, %v416
    %418 = vdwg.mxu0
    %v419 = vsub.f32 %v61, %v417
    %v420 = vmul.f32 %v419, %v419
    %v421 = vand.u32 %v77, 4294901760
    %422 = vmatpush.msra.mxu0 %v421
    %v423 = vand.u32 %v76, 4294901760
    %424 = vmatpush.msra.mxu0 %v423
    %v425 = vand.u32 %v75, 4294901760
    %426 = vmatpush.msra.mxu0 %v425
    %v427 = vand.u32 %v74, 4294901760
    %428 = vmatpush.msra.mxu0 %v427
    %v429 = vand.u32 %v73, 4294901760
    %430 = vmatpush.msra.mxu0 %v429
    %v431 = vand.u32 %v72, 4294901760
    %432 = vmatpush.msra.mxu0 %v431
    %v433 = vand.u32 %v71, 4294901760
    %434 = vmatpush.msra.mxu0 %v433
    %v435 = vand.u32 %v70, 4294901760
    %436 = vmatpush.msra.mxu0 %v435
    %v437 = vand.u32 %v69, 4294901760
    %438 = vmatpush.msra.mxu0 %v437
    %v439 = vand.u32 %v68, 4294901760
    %440 = vmatpush.msra.mxu0 %v439
    %v441 = vand.u32 %v67, 4294901760
    %442 = vmatpush.msra.mxu0 %v441
    %v443 = vand.u32 %v66, 4294901760
    %444 = vmatpush.msra.mxu0 %v443
    %v445 = vand.u32 %v65, 4294901760
    %446 = vmatpush.msra.mxu0 %v445
    %v447 = vand.u32 %v64, 4294901760
    %448 = vmatpush.msra.mxu0 %v447
    %v449 = vand.u32 %v63, 4294901760
    %450 = vmatpush.msra.mxu0 %v449
    %v451 = vand.u32 %v62, 4294901760
    %452 = vmatpush.msra.mxu0 %v451
    %v453 = vand.u32 %v420, 4294901760
    %v454 = vsub.f32 %v420, %v453
    %v455 = vand.u32 %v454, 4294901760
    %v456 = vsub.f32 %v454, %v455
    %v457 = vand.u32 %v456, 4294901760
    %458 = vmatmul.f32.gmra.mxu0 %v457
    %v459 = vpop.f32.mrf.mxu0
    %v460 = vadd.f32 1e-05, %v459
    %461 = vdwg.mxu0
    %v462 = vand.u32 %v77, 4294901760
    %v463 = vsub.f32 %v77, %v462
    %v464 = vand.u32 %v463, 4294901760
    %v465 = vsub.f32 %v463, %v464
    %v466 = vand.u32 %v465, 4294901760
    %467 = vmatpush.msra.mxu0 %v466
    %v468 = vand.u32 %v76, 4294901760
    %v469 = vsub.f32 %v76, %v468
    %v470 = vand.u32 %v469, 4294901760
    %v471 = vsub.f32 %v469, %v470
    %v472 = vand.u32 %v471, 4294901760
    %473 = vmatpush.msra.mxu0 %v472
    %v474 = vand.u32 %v75, 4294901760
    %v475 = vsub.f32 %v75, %v474
    %v476 = vand.u32 %v475, 4294901760
    %v477 = vsub.f32 %v475, %v476
    %v478 = vand.u32 %v477, 4294901760
    %479 = vmatpush.msra.mxu0 %v478
    %v480 = vand.u32 %v74, 4294901760
    %v481 = vsub.f32 %v74, %v480
    %v482 = vand.u32 %v481, 4294901760
    %v483 = vsub.f32 %v481, %v482
    %v484 = vand.u32 %v483, 4294901760
    %485 = vmatpush.msra.mxu0 %v484
    %v486 = vand.u32 %v73, 4294901760
    %v487 = vsub.f32 %v73, %v486
    %v488 = vand.u32 %v487, 4294901760
    %v489 = vsub.f32 %v487, %v488
    %v490 = vand.u32 %v489, 4294901760
    %491 = vmatpush.msra.mxu0 %v490
    %v492 = vand.u32 %v72, 4294901760
    %v493 = vsub.f32 %v72, %v492
    %v494 = vand.u32 %v493, 4294901760
    %v495 = vsub.f32 %v493, %v494
    %v496 = vand.u32 %v495, 4294901760
    %497 = vmatpush.msra.mxu0 %v496
    %v498 = vand.u32 %v71, 4294901760
    %v499 = vsub.f32 %v71, %v498
    %v500 = vand.u32 %v499, 4294901760
    %v501 = vsub.f32 %v499, %v500
    %v502 = vand.u32 %v501, 4294901760
    %503 = vmatpush.msra.mxu0 %v502
    %v504 = vand.u32 %v70, 4294901760
    %v505 = vsub.f32 %v70, %v504
    %v506 = vand.u32 %v505, 4294901760
    %v507 = vsub.f32 %v505, %v506
    %v508 = vand.u32 %v507, 4294901760
    %509 = vmatpush.msra.mxu0 %v508
    %v510 = vand.u32 %v69, 4294901760
    %v511 = vsub.f32 %v69, %v510
    %v512 = vand.u32 %v511, 4294901760
    %v513 = vsub.f32 %v511, %v512
    %v514 = vand.u32 %v513, 4294901760
    %515 = vmatpush.msra.mxu0 %v514
    %v516 = vand.u32 %v68, 4294901760
    %v517 = vsub.f32 %v68, %v516
    %v518 = vand.u32 %v517, 4294901760
    %v519 = vsub.f32 %v517, %v518
    %v520 = vand.u32 %v519, 4294901760
    %521 = vmatpush.msra.mxu0 %v520
    %v522 = vand.u32 %v67, 4294901760
    %v523 = vsub.f32 %v67, %v522
    %v524 = vand.u32 %v523, 4294901760
    %v525 = vsub.f32 %v523, %v524
    %v526 = vand.u32 %v525, 4294901760
    %527 = vmatpush.msra.mxu0 %v526
    %v528 = vand.u32 %v66, 4294901760
    %v529 = vsub.f32 %v66, %v528
    %v530 = vand.u32 %v529, 4294901760
    %v531 = vsub.f32 %v529, %v530
    %v532 = vand.u32 %v531, 4294901760
    %533 = vmatpush.msra.mxu0 %v532
    %v534 = vand.u32 %v65, 4294901760
    %v535 = vsub.f32 %v65, %v534
    %v536 = vand.u32 %v535, 4294901760
    %v537 = vsub.f32 %v535, %v536
    %v538 = vand.u32 %v537, 4294901760
    %539 = vmatpush.msra.mxu0 %v538
    %v540 = vand.u32 %v64, 4294901760
    %v541 = vsub.f32 %v64, %v540
    %v542 = vand.u32 %v541, 4294901760
    %v543 = vsub.f32 %v541, %v542
    %v544 = vand.u32 %v543, 4294901760
    %545 = vmatpush.msra.mxu0 %v544
    %v546 = vand.u32 %v63, 4294901760
    %v547 = vsub.f32 %v63, %v546
    %v548 = vand.u32 %v547, 4294901760
    %v549 = vsub.f32 %v547, %v548
    %v550 = vand.u32 %v549, 4294901760
    %551 = vmatpush.msra.mxu0 %v550
    %v552 = vand.u32 %v62, 4294901760
    %v553 = vsub.f32 %v62, %v552
    %v554 = vand.u32 %v553, 4294901760
    %v555 = vsub.f32 %v553, %v554
    %v556 = vand.u32 %v555, 4294901760
    %557 = vmatpush.msra.mxu0 %v556
    %v558 = vand.u32 %v420, 4294901760
    %559 = vmatmul.f32.gmra.mxu0 %v558
    %v560 = vpop.f32.mrf.mxu0
    %v561 = vadd.f32 %v460, %v560
    %562 = vdwg.mxu0
    %v563 = vand.u32 %v77, 4294901760
    %v564 = vsub.f32 %v77, %v563
    %565 = vmatpush.msra.mxu0 %v564
    %v566 = vand.u32 %v76, 4294901760
    %v567 = vsub.f32 %v76, %v566
    %568 = vmatpush.msra.mxu0 %v567
    %v569 = vand.u32 %v75, 4294901760
    %v570 = vsub.f32 %v75, %v569
    %571 = vmatpush.msra.mxu0 %v570
    %v572 = vand.u32 %v74, 4294901760
    %v573 = vsub.f32 %v74, %v572
    %574 = vmatpush.msra.mxu0 %v573
    %v575 = vand.u32 %v73, 4294901760
    %v576 = vsub.f32 %v73, %v575
    %577 = vmatpush.msra.mxu0 %v576
    %v578 = vand.u32 %v72, 4294901760
    %v579 = vsub.f32 %v72, %v578
    %580 = vmatpush.msra.mxu0 %v579
    %v581 = vand.u32 %v71, 4294901760
    %v582 = vsub.f32 %v71, %v581
    %583 = vmatpush.msra.mxu0 %v582
    %v584 = vand.u32 %v70, 4294901760
    %v585 = vsub.f32 %v70, %v584
    %586 = vmatpush.msra.mxu0 %v585
    %v587 = vand.u32 %v69, 4294901760
    %v588 = vsub.f32 %v69, %v587
    %589 = vmatpush.msra.mxu0 %v588
    %v590 = vand.u32 %v68, 4294901760
    %v591 = vsub.f32 %v68, %v590
    %592 = vmatpush.msra.mxu0 %v591
    %v593 = vand.u32 %v67, 4294901760
    %v594 = vsub.f32 %v67, %v593
    %595 = vmatpush.msra.mxu0 %v594
    %v596 = vand.u32 %v66, 4294901760
    %v597 = vsub.f32 %v66, %v596
    %598 = vmatpush.msra.mxu0 %v597
    %v599 = vand.u32 %v65, 4294901760
    %v600 = vsub.f32 %v65, %v599
    %601 = vmatpush.msra.mxu0 %v600
    %v602 = vand.u32 %v64, 4294901760
    %v603 = vsub.f32 %v64, %v602
    %604 = vmatpush.msra.mxu0 %v603
    %v605 = vand.u32 %v63, 4294901760
    %v606 = vsub.f32 %v63, %v605
    %607 = vmatpush.msra.mxu0 %v606
    %v608 = vand.u32 %v62, 4294901760
    %v609 = vsub.f32 %v62, %v608
    %610 = vmatpush.msra.mxu0 %v609
    %v611 = vand.u32 %v420, 4294901760
    %v612 = vsub.f32 %v420, %v611
    %613 = vmatmul.f32.gmra.mxu0 %v612
    %v614 = vpop.f32.mrf.mxu0
    %v615 = vadd.f32 %v561, %v614
    %616 = vdwg.mxu0
    %v617 = vand.u32 %v77, 4294901760
    %618 = vmatpush.msra.mxu0 %v617
    %v619 = vand.u32 %v76, 4294901760
    %620 = vmatpush.msra.mxu0 %v619
    %v621 = vand.u32 %v75, 4294901760
    %622 = vmatpush.msra.mxu0 %v621
    %v623 = vand.u32 %v74, 4294901760
    %624 = vmatpush.msra.mxu0 %v623
    %v625 = vand.u32 %v73, 4294901760
    %626 = vmatpush.msra.mxu0 %v625
    %v627 = vand.u32 %v72, 4294901760
    %628 = vmatpush.msra.mxu0 %v627
    %v629 = vand.u32 %v71, 4294901760
    %630 = vmatpush.msra.mxu0 %v629
    %v631 = vand.u32 %v70, 4294901760
    %632 = vmatpush.msra.mxu0 %v631
    %v633 = vand.u32 %v69, 4294901760
    %634 = vmatpush.msra.mxu0 %v633
    %v635 = vand.u32 %v68, 4294901760
    %636 = vmatpush.msra.mxu0 %v635
    %v637 = vand.u32 %v67, 4294901760
    %638 = vmatpush.msra.mxu0 %v637
    %v639 = vand.u32 %v66, 4294901760
    %640 = vmatpush.msra.mxu0 %v639
    %v641 = vand.u32 %v65, 4294901760
    %642 = vmatpush.msra.mxu0 %v641
    %v643 = vand.u32 %v64, 4294901760
    %644 = vmatpush.msra.mxu0 %v643
    %v645 = vand.u32 %v63, 4294901760
    %646 = vmatpush.msra.mxu0 %v645
    %v647 = vand.u32 %v62, 4294901760
    %648 = vmatpush.msra.mxu0 %v647
    %v649 = vand.u32 %v420, 4294901760
    %v650 = vsub.f32 %v420, %v649
    %v651 = vand.u32 %v650, 4294901760
    %652 = vmatmul.f32.gmra.mxu0 %v651
    %v653 = vpop.f32.mrf.mxu0
    %v654 = vadd.f32 %v615, %v653
    %655 = vdwg.mxu0
    %v656 = vand.u32 %v77, 4294901760
    %v657 = vsub.f32 %v77, %v656
    %v658 = vand.u32 %v657, 4294901760
    %659 = vmatpush.msra.mxu0 %v658
    %v660 = vand.u32 %v76, 4294901760
    %v661 = vsub.f32 %v76, %v660
    %v662 = vand.u32 %v661, 4294901760
    %663 = vmatpush.msra.mxu0 %v662
    %v664 = vand.u32 %v75, 4294901760
    %v665 = vsub.f32 %v75, %v664
    %v666 = vand.u32 %v665, 4294901760
    %667 = vmatpush.msra.mxu0 %v666
    %v668 = vand.u32 %v74, 4294901760
    %v669 = vsub.f32 %v74, %v668
    %v670 = vand.u32 %v669, 4294901760
    %671 = vmatpush.msra.mxu0 %v670
    %v672 = vand.u32 %v73, 4294901760
    %v673 = vsub.f32 %v73, %v672
    %v674 = vand.u32 %v673, 4294901760
    %675 = vmatpush.msra.mxu0 %v674
    %v676 = vand.u32 %v72, 4294901760
    %v677 = vsub.f32 %v72, %v676
    %v678 = vand.u32 %v677, 4294901760
    %679 = vmatpush.msra.mxu0 %v678
    %v680 = vand.u32 %v71, 4294901760
    %v681 = vsub.f32 %v71, %v680
    %v682 = vand.u32 %v681, 4294901760
    %683 = vmatpush.msra.mxu0 %v682
    %v684 = vand.u32 %v70, 4294901760
    %v685 = vsub.f32 %v70, %v684
    %v686 = vand.u32 %v685, 4294901760
    %687 = vmatpush.msra.mxu0 %v686
    %v688 = vand.u32 %v69, 4294901760
    %v689 = vsub.f32 %v69, %v688
    %v690 = vand.u32 %v689, 4294901760
    %691 = vmatpush.msra.mxu0 %v690
    %v692 = vand.u32 %v68, 4294901760
    %v693 = vsub.f32 %v68, %v692
    %v694 = vand.u32 %v693, 4294901760
    %695 = vmatpush.msra.mxu0 %v694
    %v696 = vand.u32 %v67, 4294901760
    %v697 = vsub.f32 %v67, %v696
    %v698 = vand.u32 %v697, 4294901760
    %699 = vmatpush.msra.mxu0 %v698
    %v700 = vand.u32 %v66, 4294901760
    %v701 = vsub.f32 %v66, %v700
    %v702 = vand.u32 %v701, 4294901760
    %703 = vmatpush.msra.mxu0 %v702
    %v704 = vand.u32 %v65, 4294901760
    %v705 = vsub.f32 %v65, %v704
    %v706 = vand.u32 %v705, 4294901760
    %707 = vmatpush.msra.mxu0 %v706
    %v708 = vand.u32 %v64, 4294901760
    %v709 = vsub.f32 %v64, %v708
    %v710 = vand.u32 %v709, 4294901760
    %711 = vmatpush.msra.mxu0 %v710
    %v712 = vand.u32 %v63, 4294901760
    %v713 = vsub.f32 %v63, %v712
    %v714 = vand.u32 %v713, 4294901760
    %715 = vmatpush.msra.mxu0 %v714
    %v716 = vand.u32 %v62, 4294901760
    %v717 = vsub.f32 %v62, %v716
    %v718 = vand.u32 %v717, 4294901760
    %719 = vmatpush.msra.mxu0 %v718
    %v720 = vand.u32 %v420, 4294901760
    %721 = vmatmul.f32.gmra.mxu0 %v720
    %v722 = vpop.f32.mrf.mxu0
    %v723 = vadd.f32 %v654, %v722
    %724 = vdwg.mxu0
    %v725 = vand.u32 %v77, 4294901760
    %726 = vmatpush.msra.mxu0 %v725
    %v727 = vand.u32 %v76, 4294901760
    %728 = vmatpush.msra.mxu0 %v727
    %v729 = vand.u32 %v75, 4294901760
    %730 = vmatpush.msra.mxu0 %v729
    %v731 = vand.u32 %v74, 4294901760
    %732 = vmatpush.msra.mxu0 %v731
    %v733 = vand.u32 %v73, 4294901760
    %734 = vmatpush.msra.mxu0 %v733
    %v735 = vand.u32 %v72, 4294901760
    %736 = vmatpush.msra.mxu0 %v735
    %v737 = vand.u32 %v71, 4294901760
    %738 = vmatpush.msra.mxu0 %v737
    %v739 = vand.u32 %v70, 4294901760
    %740 = vmatpush.msra.mxu0 %v739
    %v741 = vand.u32 %v69, 4294901760
    %742 = vmatpush.msra.mxu0 %v741
    %v743 = vand.u32 %v68, 4294901760
    %744 = vmatpush.msra.mxu0 %v743
    %v745 = vand.u32 %v67, 4294901760
    %746 = vmatpush.msra.mxu0 %v745
    %v747 = vand.u32 %v66, 4294901760
    %748 = vmatpush.msra.mxu0 %v747
    %v749 = vand.u32 %v65, 4294901760
    %750 = vmatpush.msra.mxu0 %v749
    %v751 = vand.u32 %v64, 4294901760
    %752 = vmatpush.msra.mxu0 %v751
    %v753 = vand.u32 %v63, 4294901760
    %754 = vmatpush.msra.mxu0 %v753
    %v755 = vand.u32 %v62, 4294901760
    %756 = vmatpush.msra.mxu0 %v755
    %v757 = vand.u32 %v420, 4294901760
    %758 = vmatmul.f32.gmra.mxu0 %v757
    %v759 = vpop.f32.mrf.mxu0
    %v760 = vadd.f32 %v723, %v759
    %761 = vdwg.mxu0
    %v762 = vrsqrt.pop %v760
    %v763 = vmul.f32 %v762, %v760
    %v764 = vmul.f32 %v763, %v762
    %v765 = vmul.f32 0.5, %v764
    %v766 = vsub.f32 1.5, %v765
    %v767 = vmul.f32 %v762, %v766
    %vm768 = vweird.f32 %v760
    %vm769 = vweird.f32 %v762
    %vm770 = vmor %vm768, %vm769
    %v771 = vsel %vm770, %v762, %v767
    %v772 = vmul.f32 %v419, %v771
    %v773 = vld [vmem:[#allocation5] sm:$0x1]
    %v775 = vperm.slane %v773, 0
    %v777 = vmul.f32 %v772, %v775
    %v778 = vld [vmem:[%s2] sm:$0x1]
    %v780 = vperm.slane %v778, 0
    %v782 = vadd.f32 %v777, %v780
    %783 = vst [vmem:[#allocation8] sm:$0xff] %v782
    // Predicated region
    $region30: #{tpu_custom_call.1} parent=1 // pred_check
      _
    $region31: #{tpu_custom_call.1} parent=1 // pred_check_branch
      %785 = sbr.rel (0) target = $region33
    $region32: #{tpu_custom_call.1} parent=1 // pred_region
      %787 = vsyncadd [#allocation4], 0
      %s789 = sshll.u32 [#allocation8], 4
      %s790 = int_to_ptr.vmem [resolvable:$true] %s789
      %s791 = sshll.u32 %s4, 4
      %s792 = int_to_ptr.hbm [resolvable:$true] %s791
      %794 = dma.vmem_to_hbm [thread:$0]  %s790, 128, %s792, [#allocation4]
    $region33: #{tpu_custom_call.1} parent=1 // pred_fallthru
      _
    // Predicated region
    $region34: #{tpu_custom_call.1} parent=1 // pred_check
      _
    $region35: #{tpu_custom_call.1} parent=1 // pred_check_branch
      %796 = sbr.rel (0) target = $region37
    $region36: #{tpu_custom_call.1} parent=1 // pred_region
      %798 = dma.done [#allocation4], 128
    $region37: #{tpu_custom_call.1} parent=1 // pred_fallthru
      _
    %799 = vsyncpa [#allocation3], 1
    %800 = vsyncpa [#allocation6], 1
    %801 = vsyncpa [#allocation4], 1

</llo_original>
